<compile_context>
chip_gen: v7x
topology: tpu7x:2x2x1
jax: 0.10.0
libtpu: 0.0.40
codegen_flags: <defaults>
</compile_context>

<pallas_src>
import functools

import jax
import jax.numpy as jnp
import numpy as np
from jax.experimental import pallas as pl
from jax.experimental.pallas import tpu as pltpu

_LANES = 128


def _cdiv(a, b):
    return -(-a // b)


def _round_up(x, m):
    return ((x + m - 1) // m) * m


@functools.lru_cache(maxsize=None)
def _tpu_hw():
    """Returns (num_tensorcores, vmem_capacity_bytes) with safe fallbacks."""
    cores = 1
    vmem = 64 << 20  # v7x floor: plans derived from this fit every generation
    try:
        info = pltpu.get_tpu_info()
    except Exception:
        info = None
    if info is not None:
        for attr in ("vmem_capacity_bytes", "vmem_bytes", "vmem_size_bytes"):
            v = getattr(info, attr, None)
            if isinstance(v, int) and v > 0:
                vmem = v
                break
        for attr in ("num_cores", "tensorcores_per_chip", "num_tensorcores",
                     "cores_per_chip"):
            v = getattr(info, attr, None)
            if isinstance(v, int) and v == 2:   # only trust an exact per-chip "2"
                cores = 2
                break
    return cores, vmem


def _gran(*arrays):
    """Row granularity of the second-minor dim across all streamed dtypes."""
    return max(32 // a.dtype.itemsize for a in arrays)


def _plan(r_total, bytes_per_r, budget_bytes, gran, n_cores):
    """Tile plan -> (tile_r, n_par, n_seq, needs_mask).

    Uses a cdiv grid; the (possibly partial / duplicated) tail tile is masked
    inside the kernel, so tile_r never has to divide r_total exactly.
    """
    cap = max(gran, (budget_bytes // max(bytes_per_r, 1)) // gran * gran)
    if r_total <= cap and (n_cores <= 1 or r_total < 2 * gran):
        return r_total, 1, 1, False                      # single full-extent block
    if r_total <= cap:                                   # fits, split rows per core
        tile_r = _round_up(_cdiv(r_total, n_cores), gran)
        n_par, n_seq = n_cores, 1
    else:
        tile_r = cap
        n_blocks = _cdiv(r_total, tile_r)
        if n_cores > 1 and n_blocks >= n_cores:
            n_par, n_seq = n_cores, _cdiv(n_blocks, n_cores)
        else:
            n_par, n_seq = 1, n_blocks
    needs_mask = n_par * n_seq * tile_r != r_total
    return tile_r, n_par, n_seq, needs_mask


def _lane_fold(x):
    """Fold (..., 128) f32 to an (8, 128) vreg partial with pure VPU adds.

    tile_r is a multiple of 8 in all multi-step plans, so the reshape is
    layout-free; only tiny single-step full-extent tiles hit the pad path.
    """
    flat = x.reshape(-1, _LANES)
    n = flat.shape[0]
    pad = (-n) % 8
    if pad:
        flat = jnp.concatenate(
            [flat, jnp.zeros((pad, _LANES), flat.dtype)], axis=0)
    return jnp.sum(flat.reshape(-1, 8, _LANES), axis=0)


def _make_loss_kernel(tile_r, n_seq, r_total, needs_mask):
    """Accumulates [bce_sum, masked_sq_sum, mask_pixel_sum] per parallel slice."""

    def kernel(seg_ref, mask_ref, reg_ref, off_ref, out_ref, acc_ref):
        p, s = pl.program_id(0), pl.program_id(1)

        @pl.when(s == 0)
        def _():
            acc_ref[...] = jnp.zeros_like(acc_ref)

        x = seg_ref[...].astype(jnp.float32)      # (B, tile_r, 128) logits
        y = mask_ref[...].astype(jnp.float32)     # (B, tile_r, 128) targets
        r = reg_ref[...].astype(jnp.float32)      # (B, Cr, tile_r, 128)
        o = off_ref[...].astype(jnp.float32)      # (B, Cr, tile_r, 128)

        # Numerically-stable BCE-with-logits (matches torch BCEWithLogitsLoss):
        #   max(x,0) - x*y + log1p(exp(-|x|))
        bce = jnp.maximum(x, 0.0) - x * y + jnp.log1p(jnp.exp(-jnp.abs(x)))

        d = r - o
        sq = jnp.sum(d * d, axis=1)               # channel fold (VPU adds)

        if needs_mask:
            # Zero contributions from rows past R in the partial/clamped tail tile
            # (OOB reads return garbage, possibly NaN -> must use where, not *0).
            row0 = (p * n_seq + s) * tile_r
            rows = jax.lax.broadcasted_iota(jnp.int32, (tile_r, _LANES), 0) + row0
            valid = rows < r_total
            zero = jnp.float32(0.0)
            bce = jnp.where(valid, bce, zero)
            y = jnp.where(valid, y, zero)
            sq = jnp.where(valid, sq, zero)

        m = (y != 0).astype(jnp.float32)          # mask.to(bool) semantics

        acc_ref[0] += _lane_fold(bce)
        acc_ref[1] += _lane_fold(sq * m)
        acc_ref[2] += _lane_fold(m)

        @pl.when(s == pl.num_programs(1) - 1)
        def _():
            out_ref[0, 0] = jnp.sum(acc_ref[0])
            out_ref[0, 1] = jnp.sum(acc_ref[1])
            out_ref[0, 2] = jnp.sum(acc_ref[2])

    return kernel


def _make_pretrain_kernel(tile_r, n_seq, r_total, needs_mask):
    """Accumulates sum((seg - mask)^2) only (pretrain path: seg+mask streams)."""

    def kernel(seg_ref, mask_ref, out_ref, acc_ref):
        p, s = pl.program_id(0), pl.program_id(1)

        @pl.when(s == 0)
        def _():
            acc_ref[...] = jnp.zeros_like(acc_ref)

        x = seg_ref[...].astype(jnp.float32)
        y = mask_ref[...].astype(jnp.float32)
        dd = (x - y) * (x - y)

        if needs_mask:
            row0 = (p * n_seq + s) * tile_r
            rows = jax.lax.broadcasted_iota(jnp.int32, (tile_r, _LANES), 0) + row0
            dd = jnp.where(rows < r_total, dd, jnp.float32(0.0))

        acc_ref[...] += _lane_fold(dd)

        @pl.when(s == pl.num_programs(1) - 1)
        def _():
            out_ref[0, 0] = jnp.sum(acc_ref[...])

    return kernel


@functools.partial(
    jax.jit,
    static_argnames=("pretrain", "lambda_coord", "tile_budget_bytes",
                     "num_cores", "use_core_parallel"))
def my_loss(seg_pred, reg_pred, mask, offset, *, pretrain=False,
            lambda_coord=1.0, tile_budget_bytes=12 << 20, num_cores=None,
            use_core_parallel=False):
    """JAX/Pallas port of MyLoss.forward.

    seg_pred: (B, 1, H, W) f32 logits     mask:   (B, 1, H, W) int/bool
    reg_pred: (B, 2, H, W) f32            offset: (B, 2, H, W) f32
    """
    assert seg_pred.shape == mask.shape, f"seg_pred: {seg_pred.shape}, mask: {mask.shape}"
    assert reg_pred.shape == offset.shape, f"reg_pred: {reg_pred.shape}, offset: {offset.shape}"

    B, Cs, H, W = seg_pred.shape
    _, Cr, _, _ = reg_pred.shape
    assert Cs == 1, "segmentation head / mask must have a single channel"
    HW = H * W
    assert HW % _LANES == 0, "H*W must be a multiple of 128"
    # TODO(synk): pad H*W to a multiple of 128 for exotic resolutions.
    R = HW // _LANES

    # 1-byte mask stream (bool -> int8); int8/uint8/int32 masks pass through
    # untouched and are cast to f32 on-chip only.
    if mask.dtype == jnp.bool_:
        mask = mask.astype(jnp.int8)

    hw_cores, vmem_phys = _tpu_hw()
    n_cores = hw_cores if num_cores is None else max(1, int(num_cores))

    # Byte budget per grid step, capped so double-buffered blocks + scratch fit
    # comfortably under the physical VMEM of the smallest detected generation.
    budget = int(min(int(tile_budget_bytes),
                     max(1 << 20, (int(0.70 * vmem_phys) - (4 << 20)) // 2)))

    # Copy-free reshapes: spatial axis -> (R sublane-chunks, 128 lanes).
    seg = seg_pred.reshape(B, R, _LANES)
    msk = mask.reshape(B, R, _LANES)

    n_seg = jnp.float32(B * Cs * HW)

    def _compiler_params(n_par, tile_r, bytes_per_r):
        slab = tile_r * bytes_per_r
        vmem_limit = int(min(0.9 * vmem_phys, max(16 << 20, 2 * slab + (8 << 20))))
        lead = (pltpu.CORE_PARALLEL if (use_core_parallel and n_par > 1)
                else "parallel")
        # TODO(synk): verify with xprof that the leading axis shards both v7x
        # TensorCores under plain "parallel"; flip use_core_parallel if not.
        return pltpu.CompilerParams(
            dimension_semantics=(lead, "arbitrary"),
            vmem_limit_bytes=vmem_limit)

    if pretrain:
        gran = _gran(seg, msk)
        bytes_per_r = B * _LANES * (seg.dtype.itemsize + msk.dtype.itemsize)
        tile_r, n_par, n_seq, needs_mask = _plan(R, bytes_per_r, budget, gran, n_cores)
        last_blk = _cdiv(R, tile_r) - 1
        idx3 = lambda p, s: (0, jnp.minimum(p * n_seq + s, last_blk), 0)

        cost = pl.CostEstimate(
            flops=int(3 * B * HW),
            transcendentals=0,
            bytes_accessed=int(seg.size * seg.dtype.itemsize
                               + msk.size * msk.dtype.itemsize + 4 * n_par))
        partials = pl.pallas_call(
            _make_pretrain_kernel(tile_r, n_seq, R, needs_mask),
            out_shape=jax.ShapeDtypeStruct((n_par, 1), jnp.float32),
            grid_spec=pltpu.PrefetchScalarGridSpec(
                num_scalar_prefetch=0,
                grid=(n_par, n_seq),
                in_specs=[
                    pl.BlockSpec((B, tile_r, _LANES), idx3),
                    pl.BlockSpec((B, tile_r, _LANES), idx3),
                ],
                out_specs=pl.BlockSpec((1, 1), lambda p, s: (p, 0),
                                       memory_space=pltpu.SMEM),
                scratch_shapes=[pltpu.VMEM((8, _LANES), jnp.float32)],
            ),
            compiler_params=_compiler_params(n_par, tile_r, bytes_per_r),
            cost_estimate=cost,
        )(seg, msk)
        return {"loss": jnp.sum(partials) / n_seg}

    reg = reg_pred.reshape(B, Cr, R, _LANES)
    off = offset.reshape(B, Cr, R, _LANES)

    gran = _gran(seg, msk, reg, off)
    bytes_per_r = B * _LANES * (seg.dtype.itemsize + msk.dtype.itemsize
                                + Cr * (reg.dtype.itemsize + off.dtype.itemsize))
    tile_r, n_par, n_seq, needs_mask = _plan(R, bytes_per_r, budget, gran, n_cores)
    last_blk = _cdiv(R, tile_r) - 1
    idx3 = lambda p, s: (0, jnp.minimum(p * n_seq + s, last_blk), 0)
    idx4 = lambda p, s: (0, 0, jnp.minimum(p * n_seq + s, last_blk), 0)

    cost = pl.CostEstimate(
        flops=int(10 * B * HW + 5 * B * Cr * HW),
        transcendentals=int(2 * B * HW),
        bytes_accessed=int(seg.size * seg.dtype.itemsize
                           + msk.size * msk.dtype.itemsize
                           + reg.size * reg.dtype.itemsize
                           + off.size * off.dtype.itemsize + 12 * n_par))

    # TODO(synk): if xprof shows DMA-issue gaps at step boundaries on v7x, add
    # pipeline_mode=pl.Buffered(3) on the small seg/mask streams.
    partials = pl.pallas_call(
        _make_loss_kernel(tile_r, n_seq, R, needs_mask),
        out_shape=jax.ShapeDtypeStruct((n_par, 3), jnp.float32),
        grid_spec=pltpu.PrefetchScalarGridSpec(
            num_scalar_prefetch=0,
            grid=(n_par, n_seq),
            in_specs=[
                pl.BlockSpec((B, tile_r, _LANES), idx3),
                pl.BlockSpec((B, tile_r, _LANES), idx3),
                pl.BlockSpec((B, Cr, tile_r, _LANES), idx4),
                pl.BlockSpec((B, Cr, tile_r, _LANES), idx4),
            ],
            out_specs=pl.BlockSpec((1, 3), lambda p, s: (p, 0),
                                   memory_space=pltpu.SMEM),
            scratch_shapes=[pltpu.VMEM((3, 8, _LANES), jnp.float32)],
        ),
        compiler_params=_compiler_params(n_par, tile_r, bytes_per_r),
        cost_estimate=cost,
    )(seg, msk, reg, off)

    sums = jnp.sum(partials, axis=0)          # (3,) cross-core combine
    bce_sum, masked_sq_sum, mask_px_sum = sums[0], sums[1], sums[2]

    loss_seg = bce_sum / n_seg
    count = mask_px_sum * jnp.float32(Cr)     # number of masked reg elements
    loss_reg = jnp.where(count > 0,
                         masked_sq_sum / jnp.maximum(count, 1.0),
                         jnp.float32(0.0))
    loss_total = loss_seg + jnp.float32(lambda_coord) * loss_reg
    return {"loss_seg": loss_seg, "loss_reg": loss_reg, "loss": loss_total}


def _reference(seg_pred, reg_pred, mask, offset, lambda_coord=1.0):
    """Pure-JAX reference mirroring the PyTorch module (non-pretrain path)."""
    x = seg_pred.astype(jnp.float32)
    y = mask.astype(jnp.float32)
    bce = jnp.maximum(x, 0.0) - x * y + jnp.log1p(jnp.exp(-jnp.abs(x)))
    loss_seg = jnp.mean(bce)
    m = jnp.broadcast_to((mask != 0).astype(jnp.float32), reg_pred.shape)
    sq = (reg_pred - offset) ** 2
    cnt = jnp.sum(m)
    loss_reg = jnp.where(cnt > 0, jnp.sum(sq * m) / jnp.maximum(cnt, 1.0), 0.0)
    return loss_seg, loss_reg, loss_seg + lambda_coord * loss_reg


def _check(out, seg, reg, msk, off):
    rs, rr, rt = _reference(seg, reg, msk, off)
    np.testing.assert_allclose(np.asarray(out["loss_seg"]), np.asarray(rs), rtol=1e-5, atol=1e-5)
    np.testing.assert_allclose(np.asarray(out["loss_reg"]), np.asarray(rr), rtol=1e-5, atol=1e-5)
    np.testing.assert_allclose(np.asarray(out["loss"]), np.asarray(rt), rtol=1e-5, atol=1e-5)


if __name__ == "__main__":
    key = jax.random.PRNGKey(0)
    k1, k2, k3, k4 = jax.random.split(key, 4)

    # Small shape consistent with the module: B=2, seg (B,1,H,W), reg (B,2,H,W).
    B, H, W = 2, 16, 16
    seg_pred = jax.random.normal(k1, (B, 1, H, W), jnp.float32)
    reg_pred = jax.random.normal(k2, (B, 2, H, W), jnp.float32)
    offset = jax.random.normal(k3, (B, 2, H, W), jnp.float32)
    mask = jax.random.bernoulli(k4, 0.3, (B, 1, H, W)).astype(jnp.int8)

    out = my_loss(seg_pred, reg_pred, mask, offset, lambda_coord=1.0)
    out = jax.tree_util.tree_map(jax.block_until_ready, out)
    _check(out, seg_pred, reg_pred, mask, offset)

    # A bool mask takes the cheap bool->int8 conversion path and must match.
    out_bool = my_loss(seg_pred, reg_pred, mask.astype(jnp.bool_), offset)
    out_bool = jax.tree_util.tree_map(jax.block_until_ready, out_bool)
    np.testing.assert_allclose(np.asarray(out_bool["loss"]), np.asarray(out["loss"]),
                               rtol=1e-6, atol=1e-6)

    # Pretrain path: MSE of seg logits vs float mask (specialized kernel).
    out_pre = my_loss(seg_pred, reg_pred, mask, offset, pretrain=True)
    jax.block_until_ready(out_pre["loss"])
    ref_pre = jnp.mean((seg_pred - mask.astype(jnp.float32)) ** 2)
    np.testing.assert_allclose(np.asarray(out_pre["loss"]), np.asarray(ref_pre),
                               rtol=1e-5, atol=1e-5)

    # Multi-step accumulation, exact tiling (R=128, 32-row int8-aligned tiles).
    Hb = Wb = 128
    seg_b = jax.random.normal(k1, (B, 1, Hb, Wb), jnp.float32)
    reg_b = jax.random.normal(k2, (B, 2, Hb, Wb), jnp.float32)
    off_b = jax.random.normal(k3, (B, 2, Hb, Wb), jnp.float32)
    msk_b = jax.random.bernoulli(k4, 0.3, (B, 1, Hb, Wb)).astype(jnp.int8)
    out_b = my_loss(seg_b, reg_b, msk_b, off_b, tile_budget_bytes=200 * 1024)
    out_b = jax.tree_util.tree_map(jax.block_until_ready, out_b)
    _check(out_b, seg_b, reg_b, msk_b, off_b)

    # Ragged tiling: R=50 is not a multiple of the 32-row granularity, so the
    # cdiv grid + masked tail-tile path is exercised.
    Hc = Wc = 80
    seg_c = jax.random.normal(k1, (B, 1, Hc, Wc), jnp.float32)
    reg_c = jax.random.normal(k2, (B, 2, Hc, Wc), jnp.float32)
    off_c = jax.random.normal(k3, (B, 2, Hc, Wc), jnp.float32)
    msk_c = jax.random.bernoulli(k4, 0.3, (B, 1, Hc, Wc)).astype(jnp.int8)
    out_c = my_loss(seg_c, reg_c, msk_c, off_c, tile_budget_bytes=200 * 1024)
    out_c = jax.tree_util.tree_map(jax.block_until_ready, out_c)
    _check(out_c, seg_c, reg_c, msk_c, off_c)

    print("KERNEL_OK")
</pallas_src>

<mosaic_0001>
module attributes {stable_mosaic.version = 11 : i64} {
  func.func @kernel(%arg0: i32, %arg1: i32, %arg2: memref<2x2x128xf32, #tpu.memory_space<vmem>>, %arg3: memref<2x2x128xi8, #tpu.memory_space<vmem>>, %arg4: memref<2x2x2x128xf32, #tpu.memory_space<vmem>>, %arg5: memref<2x2x2x128xf32, #tpu.memory_space<vmem>>, %arg6: memref<1x3xf32, #tpu.memory_space<smem>>, %arg7: memref<3x8x128xf32, #tpu.memory_space<vmem>>) attributes {dimension_semantics = [#tpu.dimension_semantics<parallel>, #tpu.dimension_semantics<arbitrary>], iteration_bounds = array<i64: 1, 1>, scalar_prefetch = 0 : i64, scratch_operands = 1 : i64, tpu.core_type = #tpu.core_type<tc>, window_params = [{transform_indices = @transform_0, window_bounds = array<i64: 2, 2, 128>}, {transform_indices = @transform_1, window_bounds = array<i64: 2, 2, 128>}, {transform_indices = @transform_2, window_bounds = array<i64: 2, 2, 2, 128>}, {transform_indices = @transform_3, window_bounds = array<i64: 2, 2, 2, 128>}, {transform_indices = @transform_4, window_bounds = array<i64: 1, 3>}]} {
    %c0_i32 = arith.constant 0 : i32
    %0 = arith.cmpi eq, %arg1, %c0_i32 : i32
    %1 = arith.extui %0 : i1 to i32
    %c0_i32_0 = arith.constant 0 : i32
    %2 = arith.cmpi ne, %1, %c0_i32_0 : i32
    scf.if %2 {
      %cst_41 = arith.constant 0.000000e+00 : f32
      %62 = vector.broadcast %cst_41 : f32 to vector<3x8x128xf32>
      %c0_42 = arith.constant 0 : index
      %c0_43 = arith.constant 0 : index
      %c0_44 = arith.constant 0 : index
      %63 = vector.load %arg7[%c0_42, %c0_43, %c0_44] : memref<3x8x128xf32, #tpu.memory_space<vmem>>, vector<3x8x128xf32>
      tpu.vector_store %arg7[%c0_42, %c0_43, %c0_44], %62 {strides = array<i32>} : memref<3x8x128xf32, #tpu.memory_space<vmem>>, vector<3x8x128xf32>,
    } else {
    }
    %c0 = arith.constant 0 : index
    %c0_1 = arith.constant 0 : index
    %c0_2 = arith.constant 0 : index
    %3 = vector.load %arg2[%c0, %c0_1, %c0_2] : memref<2x2x128xf32, #tpu.memory_space<vmem>>, vector<2x2x128xf32>
    %c0_3 = arith.constant 0 : index
    %c0_4 = arith.constant 0 : index
    %c0_5 = arith.constant 0 : index
    %4 = vector.load %arg3[%c0_3, %c0_4, %c0_5] : memref<2x2x128xi8, #tpu.memory_space<vmem>>, vector<2x2x128xi8>
    %5 = arith.sitofp %4 : vector<2x2x128xi8> to vector<2x2x128xf32>
    %c0_6 = arith.constant 0 : index
    %c0_7 = arith.constant 0 : index
    %c0_8 = arith.constant 0 : index
    %c0_9 = arith.constant 0 : index
    %6 = vector.load %arg4[%c0_6, %c0_7, %c0_8, %c0_9] : memref<2x2x2x128xf32, #tpu.memory_space<vmem>>, vector<2x2x2x128xf32>
    %c0_10 = arith.constant 0 : index
    %c0_11 = arith.constant 0 : index
    %c0_12 = arith.constant 0 : index
    %c0_13 = arith.constant 0 : index
    %7 = vector.load %arg5[%c0_10, %c0_11, %c0_12, %c0_13] : memref<2x2x2x128xf32, #tpu.memory_space<vmem>>, vector<2x2x2x128xf32>
    %cst = arith.constant 0.000000e+00 : f32
    %8 = vector.broadcast %cst : f32 to vector<2x2x128xf32>
    %9 = arith.maximumf %3, %8 : vector<2x2x128xf32>
    %10 = arith.mulf %3, %5 : vector<2x2x128xf32>
    %11 = arith.subf %9, %10 : vector<2x2x128xf32>
    %12 = math.absf %3 : vector<2x2x128xf32>
    %cst_14 = arith.constant 0.000000e+00 : f32
    %13 = vector.broadcast %cst_14 : f32 to vector<2x2x128xf32>
    %14 = arith.subf %13, %12 : vector<2x2x128xf32>
    %15 = math.exp %14 : vector<2x2x128xf32>
    %16 = math.log1p %15 : vector<2x2x128xf32>
    %17 = arith.addf %11, %16 : vector<2x2x128xf32>
    %18 = arith.subf %6, %7 : vector<2x2x2x128xf32>
    %19 = arith.mulf %18, %18 : vector<2x2x2x128xf32>
    %cst_15 = arith.constant dense<0.000000e+00> : vector<2x2x128xf32>
    %20 = vector.multi_reduction <add>, %19, %cst_15 [1] : vector<2x2x2x128xf32> to vector<2x2x128xf32>
    %cst_16 = arith.constant 0.000000e+00 : f32
    %21 = vector.broadcast %cst_16 : f32 to vector<2x2x128xf32>
    %22 = arith.cmpf one, %5, %21 : vector<2x2x128xf32>
    %23 = arith.extui %22 : vector<2x2x128xi1> to vector<2x2x128xi32>
    %24 = arith.sitofp %23 : vector<2x2x128xi32> to vector<2x2x128xf32>
    %c0_17 = arith.constant 0 : index
    %c0_18 = arith.constant 0 : index
    %c0_19 = arith.constant 0 : index
    %25 = vector.load %arg7[%c0_17, %c0_18, %c0_19] : memref<3x8x128xf32, #tpu.memory_space<vmem>>, vector<1x8x128xf32>
    %26 = vector.shape_cast %25 : vector<1x8x128xf32> to vector<8x128xf32>
    %27 = vector.shape_cast %17 : vector<2x2x128xf32> to vector<4x128xf32>
    %cst_20 = arith.constant 0.000000e+00 : f32
    %28 = vector.broadcast %cst_20 : f32 to vector<4x128xf32>
    %29 = tpu.concatenate %27, %28 in 0 : vector<4x128xf32>, vector<4x128xf32> -> vector<8x128xf32>
    %30 = vector.shape_cast %29 : vector<8x128xf32> to vector<1x8x128xf32>
    %cst_21 = arith.constant dense<0.000000e+00> : vector<8x128xf32>
    %31 = vector.multi_reduction <add>, %30, %cst_21 [0] : vector<1x8x128xf32> to vector<8x128xf32>
    %32 = arith.addf %26, %31 : vector<8x128xf32>
    %c0_22 = arith.constant 0 : index
    %c0_23 = arith.constant 0 : index
    %c0_24 = arith.constant 0 : index
    %33 = vector.load %arg7[%c0_22, %c0_23, %c0_24] : memref<3x8x128xf32, #tpu.memory_space<vmem>>, vector<1x8x128xf32>
    %34 = vector.shape_cast %33 : vector<1x8x128xf32> to vector<8x128xf32>
    %35 = vector.shape_cast %32 : vector<8x128xf32> to vector<1x8x128xf32>
    tpu.vector_store %arg7[%c0_22, %c0_23, %c0_24], %35 {strides = array<i32>} : memref<3x8x128xf32, #tpu.memory_space<vmem>>, vector<1x8x128xf32>,
    %c1 = arith.constant 1 : index
    %c0_25 = arith.constant 0 : index
    %c0_26 = arith.constant 0 : index
    %36 = vector.load %arg7[%c1, %c0_25, %c0_26] : memref<3x8x128xf32, #tpu.memory_space<vmem>>, vector<1x8x128xf32>
    %37 = vector.shape_cast %36 : vector<1x8x128xf32> to vector<8x128xf32>
    %38 = arith.mulf %20, %24 : vector<2x2x128xf32>
    %39 = vector.shape_cast %38 : vector<2x2x128xf32> to vector<4x128xf32>
    %cst_27 = arith.constant 0.000000e+00 : f32
    %40 = vector.broadcast %cst_27 : f32 to vector<4x128xf32>
    %41 = tpu.concatenate %39, %40 in 0 : vector<4x128xf32>, vector<4x128xf32> -> vector<8x128xf32>
    %42 = vector.shape_cast %41 : vector<8x128xf32> to vector<1x8x128xf32>
    %cst_28 = arith.constant dense<0.000000e+00> : vector<8x128xf32>
    %43 = vector.multi_reduction <add>, %42, %cst_28 [0] : vector<1x8x128xf32> to vector<8x128xf32>
    %44 = arith.addf %37, %43 : vector<8x128xf32>
    %c1_29 = arith.constant 1 : index
    %c0_30 = arith.constant 0 : index
    %c0_31 = arith.constant 0 : index
    %45 = vector.load %arg7[%c1_29, %c0_30, %c0_31] : memref<3x8x128xf32, #tpu.memory_space<vmem>>, vector<1x8x128xf32>
    %46 = vector.shape_cast %45 : vector<1x8x128xf32> to vector<8x128xf32>
    %47 = vector.shape_cast %44 : vector<8x128xf32> to vector<1x8x128xf32>
    tpu.vector_store %arg7[%c1_29, %c0_30, %c0_31], %47 {strides = array<i32>} : memref<3x8x128xf32, #tpu.memory_space<vmem>>, vector<1x8x128xf32>,
    %c2 = arith.constant 2 : index
    %c0_32 = arith.constant 0 : index
    %c0_33 = arith.constant 0 : index
    %48 = vector.load %arg7[%c2, %c0_32, %c0_33] : memref<3x8x128xf32, #tpu.memory_space<vmem>>, vector<1x8x128xf32>
    %49 = vector.shape_cast %48 : vector<1x8x128xf32> to vector<8x128xf32>
    %50 = vector.shape_cast %24 : vector<2x2x128xf32> to vector<4x128xf32>
    %cst_34 = arith.constant 0.000000e+00 : f32
    %51 = vector.broadcast %cst_34 : f32 to vector<4x128xf32>
    %52 = tpu.concatenate %50, %51 in 0 : vector<4x128xf32>, vector<4x128xf32> -> vector<8x128xf32>
    %53 = vector.shape_cast %52 : vector<8x128xf32> to vector<1x8x128xf32>
    %cst_35 = arith.constant dense<0.000000e+00> : vector<8x128xf32>
    %54 = vector.multi_reduction <add>, %53, %cst_35 [0] : vector<1x8x128xf32> to vector<8x128xf32>
    %55 = arith.addf %49, %54 : vector<8x128xf32>
    %c2_36 = arith.constant 2 : index
    %c0_37 = arith.constant 0 : index
    %c0_38 = arith.constant 0 : index
    %56 = vector.load %arg7[%c2_36, %c0_37, %c0_38] : memref<3x8x128xf32, #tpu.memory_space<vmem>>, vector<1x8x128xf32>
    %57 = vector.shape_cast %56 : vector<1x8x128xf32> to vector<8x128xf32>
    %58 = vector.shape_cast %55 : vector<8x128xf32> to vector<1x8x128xf32>
    tpu.vector_store %arg7[%c2_36, %c0_37, %c0_38], %58 {strides = array<i32>} : memref<3x8x128xf32, #tpu.memory_space<vmem>>, vector<1x8x128xf32>,
    %c0_i32_39 = arith.constant 0 : i32
    %59 = arith.cmpi eq, %arg1, %c0_i32_39 : i32
    %60 = arith.extui %59 : i1 to i32
    %c0_i32_40 = arith.constant 0 : i32
    %61 = arith.cmpi ne, %60, %c0_i32_40 : i32
    scf.if %61 {
      %c0_41 = arith.constant 0 : index
      %c0_42 = arith.constant 0 : index
      %c0_43 = arith.constant 0 : index
      %62 = vector.load %arg7[%c0_41, %c0_42, %c0_43] : memref<3x8x128xf32, #tpu.memory_space<vmem>>, vector<1x8x128xf32>
      %63 = vector.shape_cast %62 : vector<1x8x128xf32> to vector<8x128xf32>
      %64 = vector.shape_cast %63 : vector<8x128xf32> to vector<1x8x128xf32>
      %cst_44 = arith.constant dense<0.000000e+00> : vector<1xf32>
      %65 = vector.multi_reduction <add>, %64, %cst_44 [1, 2] : vector<1x8x128xf32> to vector<1xf32>
      %66 = vector.shape_cast %65 : vector<1xf32> to vector<1x1x1xf32>
      %67 = vector.extract %66[0, 0, 0] : f32 from vector<1x1x1xf32>
      %c0_45 = arith.constant 0 : index
      %c0_46 = arith.constant 0 : index
      %68 = memref.load %arg6[%c0_45, %c0_46] : memref<1x3xf32, #tpu.memory_space<smem>>
      memref.store %67, %arg6[%c0_45, %c0_46] : memref<1x3xf32, #tpu.memory_space<smem>>
      %c1_47 = arith.constant 1 : index
      %c0_48 = arith.constant 0 : index
      %c0_49 = arith.constant 0 : index
      %69 = vector.load %arg7[%c1_47, %c0_48, %c0_49] : memref<3x8x128xf32, #tpu.memory_space<vmem>>, vector<1x8x128xf32>
      %70 = vector.shape_cast %69 : vector<1x8x128xf32> to vector<8x128xf32>
      %71 = vector.shape_cast %70 : vector<8x128xf32> to vector<1x8x128xf32>
      %cst_50 = arith.constant dense<0.000000e+00> : vector<1xf32>
      %72 = vector.multi_reduction <add>, %71, %cst_50 [1, 2] : vector<1x8x128xf32> to vector<1xf32>
      %73 = vector.shape_cast %72 : vector<1xf32> to vector<1x1x1xf32>
      %74 = vector.extract %73[0, 0, 0] : f32 from vector<1x1x1xf32>
      %c0_51 = arith.constant 0 : index
      %c1_52 = arith.constant 1 : index
      %75 = memref.load %arg6[%c0_51, %c1_52] : memref<1x3xf32, #tpu.memory_space<smem>>
      memref.store %74, %arg6[%c0_51, %c1_52] : memref<1x3xf32, #tpu.memory_space<smem>>
      %c2_53 = arith.constant 2 : index
      %c0_54 = arith.constant 0 : index
      %c0_55 = arith.constant 0 : index
      %76 = vector.load %arg7[%c2_53, %c0_54, %c0_55] : memref<3x8x128xf32, #tpu.memory_space<vmem>>, vector<1x8x128xf32>
      %77 = vector.shape_cast %76 : vector<1x8x128xf32> to vector<8x128xf32>
      %78 = vector.shape_cast %77 : vector<8x128xf32> to vector<1x8x128xf32>
      %cst_56 = arith.constant dense<0.000000e+00> : vector<1xf32>
      %79 = vector.multi_reduction <add>, %78, %cst_56 [1, 2] : vector<1x8x128xf32> to vector<1xf32>
      %80 = vector.shape_cast %79 : vector<1xf32> to vector<1x1x1xf32>
      %81 = vector.extract %80[0, 0, 0] : f32 from vector<1x1x1xf32>
      %c0_57 = arith.constant 0 : index
      %c2_58 = arith.constant 2 : index
      %82 = memref.load %arg6[%c0_57, %c2_58] : memref<1x3xf32, #tpu.memory_space<smem>>
      memref.store %81, %arg6[%c0_57, %c2_58] : memref<1x3xf32, #tpu.memory_space<smem>>
    } else {
    }
    return
  }
  func.func @transform_0(%arg0: i32, %arg1: i32) -> (i32, i32, i32) {
    %c1_i32 = arith.constant 1 : i32
    %0 = arith.muli %arg0, %c1_i32 : i32
    %1 = arith.addi %0, %arg1 : i32
    %c0_i32 = arith.constant 0 : i32
    %2 = arith.minsi %1, %c0_i32 : i32
    %c0_i32_0 = arith.constant 0 : i32
    %c0_i32_1 = arith.constant 0 : i32
    %c0_i32_2 = arith.constant 0 : i32
    return %c0_i32_0, %2, %c0_i32_1 : i32, i32, i32
  }
  func.func @transform_1(%arg0: i32, %arg1: i32) -> (i32, i32, i32) {
    %c1_i32 = arith.constant 1 : i32
    %0 = arith.muli %arg0, %c1_i32 : i32
    %1 = arith.addi %0, %arg1 : i32
    %c0_i32 = arith.constant 0 : i32
    %2 = arith.minsi %1, %c0_i32 : i32
    %c0_i32_0 = arith.constant 0 : i32
    %c0_i32_1 = arith.constant 0 : i32
    %c0_i32_2 = arith.constant 0 : i32
    return %c0_i32_0, %2, %c0_i32_1 : i32, i32, i32
  }
  func.func @transform_2(%arg0: i32, %arg1: i32) -> (i32, i32, i32, i32) {
    %c1_i32 = arith.constant 1 : i32
    %0 = arith.muli %arg0, %c1_i32 : i32
    %1 = arith.addi %0, %arg1 : i32
    %c0_i32 = arith.constant 0 : i32
    %2 = arith.minsi %1, %c0_i32 : i32
    %c0_i32_0 = arith.constant 0 : i32
    %c0_i32_1 = arith.constant 0 : i32
    %c0_i32_2 = arith.constant 0 : i32
    %c0_i32_3 = arith.constant 0 : i32
    return %c0_i32_0, %c0_i32_1, %2, %c0_i32_2 : i32, i32, i32, i32
  }
  func.func @transform_3(%arg0: i32, %arg1: i32) -> (i32, i32, i32, i32) {
    %c1_i32 = arith.constant 1 : i32
    %0 = arith.muli %arg0, %c1_i32 : i32
    %1 = arith.addi %0, %arg1 : i32
    %c0_i32 = arith.constant 0 : i32
    %2 = arith.minsi %1, %c0_i32 : i32
    %c0_i32_0 = arith.constant 0 : i32
    %c0_i32_1 = arith.constant 0 : i32
    %c0_i32_2 = arith.constant 0 : i32
    %c0_i32_3 = arith.constant 0 : i32
    return %c0_i32_0, %c0_i32_1, %2, %c0_i32_2 : i32, i32, i32, i32
  }
  func.func @transform_4(%arg0: i32, %arg1: i32) -> (i32, i32) {
    %c0_i32 = arith.constant 0 : i32
    %c0_i32_0 = arith.constant 0 : i32
    return %arg0, %c0_i32 : i32, i32
  }
}

</mosaic_0001>

<llo_original>
// kernel: my_loss.1
$region0: #{my_loss.1}
  #allocation0 [shape = 'u32[]', space=smem, size = 0x4, offset = 0x4, fixed_abs, tag = 'smem constant byte address 0x4 - core index']
  #allocation1 [shape = 'u32[144,128]{1,0:T(1,128)}', space=vmem, size = 0x12000, scoped, tag = 'internal scratch']
  #allocation2 [shape = 'f32[3,8,128]{2,1,0:T(8,128)}', space=vmem, size = 0x3000, scoped, tag = 'scratch operand']
  %s0 = inlined_call_operand.vmem [shape: f32[2,2,128], index: 0, kind: input, shape index: {}]
  %s1 = inlined_call_operand.vmem [shape: s8[2,2,128], index: 1, kind: input, shape index: {}]
  %s2 = inlined_call_operand.vmem [shape: f32[2,2,2,128], index: 2, kind: input, shape index: {}]
  %s3 = inlined_call_operand.vmem [shape: f32[2,2,2,128], index: 3, kind: input, shape index: {}]
  %s4 = inlined_call_operand.vmem [shape: f32[1,3], index: 4, kind: output, shape index: {}]
  %s5 = sld [smem:[#allocation0]]
  $region34: #{my_loss.1} parent=0
    _
  %s7 = ssub.s32 1, %s5
  %s8 = scalar_select 0, %s7, %s5
  $region1: #{my_loss.1} parent=0
    #allocation3 [shape = 'u8[512]{0}', space=smem, size = 0x200, scoped, tag = 'output window, operand 0, single buffered']
    #allocation4 [shape = 's32[1]{0}', space=sflag, size = 0x4, scoped, tag = 'scoped memory for my_loss.1']
    %9 = vsyncpa [#allocation4], 0
    // Predicated region
    $region2: #{my_loss.1} parent=1 // pred_check
      _
    $region3: #{my_loss.1} parent=1 // pred_check_branch
      %11 = sbr.rel (0) target = $region5
    $region4: #{my_loss.1} parent=1 // pred_region
      %s12 = sadd.s32 0, 0
      %p13 = scmp.lt.s32.totalorder %s12, 0
      %s14 = scalar_select %p13, %s12, 0
      %p15 = scmp.lt.s32.totalorder %s14, 0
      %s16 = scalar_select %p15, %s14, 0
      %s17 = smul.addr %s16, 2
      %s18 = scalar_lea.vmem %s0, %s17
      %s19 = sadd.s32 0, 0
      %p20 = scmp.lt.s32.totalorder %s19, 0
      %s21 = scalar_select %p20, %s19, 0
    $region5: #{my_loss.1} parent=1 // pred_fallthru
      _
    // Predicated region
    $region6: #{my_loss.1} parent=1 // pred_check
      _
    $region7: #{my_loss.1} parent=1 // pred_check_branch
      %23 = sbr.rel (0) target = $region9
    $region8: #{my_loss.1} parent=1 // pred_region
      %s24 = sadd.s32 0, 0
      %p25 = scmp.lt.s32.totalorder %s24, 0
      %s26 = scalar_select %p25, %s24, 0
      %p27 = scmp.lt.s32.totalorder %s26, 0
      %s28 = scalar_select %p27, %s26, 0
      %s29 = scalar_lea.vmem %s1, %s28
      %s30 = sadd.s32 0, 0
      %p31 = scmp.lt.s32.totalorder %s30, 0
      %s32 = scalar_select %p31, %s30, 0
    $region9: #{my_loss.1} parent=1 // pred_fallthru
      _
    // Predicated region
    $region10: #{my_loss.1} parent=1 // pred_check
      _
    $region11: #{my_loss.1} parent=1 // pred_check_branch
      %34 = sbr.rel (0) target = $region13
    $region12: #{my_loss.1} parent=1 // pred_region
      %s35 = sadd.s32 0, 0
      %p36 = scmp.lt.s32.totalorder %s35, 0
      %s37 = scalar_select %p36, %s35, 0
      %p38 = scmp.lt.s32.totalorder %s37, 0
      %s39 = scalar_select %p38, %s37, 0
      %s40 = smul.addr %s39, 2
      %s41 = scalar_lea.vmem %s2, %s40
      %s42 = sadd.s32 0, 0
      %p43 = scmp.lt.s32.totalorder %s42, 0
      %s44 = scalar_select %p43, %s42, 0
    $region13: #{my_loss.1} parent=1 // pred_fallthru
      _
    // Predicated region
    $region14: #{my_loss.1} parent=1 // pred_check
      _
    $region15: #{my_loss.1} parent=1 // pred_check_branch
      %46 = sbr.rel (0) target = $region17
    $region16: #{my_loss.1} parent=1 // pred_region
      %s47 = sadd.s32 0, 0
      %p48 = scmp.lt.s32.totalorder %s47, 0
      %s49 = scalar_select %p48, %s47, 0
      %p50 = scmp.lt.s32.totalorder %s49, 0
      %s51 = scalar_select %p50, %s49, 0
      %s52 = smul.addr %s51, 2
      %s53 = scalar_lea.vmem %s3, %s52
      %s54 = sadd.s32 0, 0
      %p55 = scmp.lt.s32.totalorder %s54, 0
      %s56 = scalar_select %p55, %s54, 0
    $region17: #{my_loss.1} parent=1 // pred_fallthru
      _
    %s57 = sadd.s32 0, 0
    %p58 = scmp.lt.s32.totalorder %s57, 0
    %s59 = scalar_select %p58, %s57, 0
    %p60 = scmp.lt.s32.totalorder %s59, 0
    %s61 = scalar_select %p60, %s59, 0
    %s62 = smul.addr %s61, 2
    %s63 = scalar_lea.vmem %s0, %s62
    %s64 = sadd.s32 0, 0
    %p65 = scmp.lt.s32.totalorder %s64, 0
    %s66 = scalar_select %p65, %s64, 0
    %p67 = scmp.lt.s32.totalorder %s66, 0
    %s68 = scalar_select %p67, %s66, 0
    %s69 = scalar_lea.vmem %s1, %s68
    %s70 = sadd.s32 0, 0
    %p71 = scmp.lt.s32.totalorder %s70, 0
    %s72 = scalar_select %p71, %s70, 0
    %p73 = scmp.lt.s32.totalorder %s72, 0
    %s74 = scalar_select %p73, %s72, 0
    %s75 = smul.addr %s74, 2
    %s76 = scalar_lea.vmem %s2, %s75
    %s77 = sadd.s32 0, 0
    %p78 = scmp.lt.s32.totalorder %s77, 0
    %s79 = scalar_select %p78, %s77, 0
    %p80 = scmp.lt.s32.totalorder %s79, 0
    %s81 = scalar_select %p80, %s79, 0
    %s82 = smul.addr %s81, 2
    %s83 = scalar_lea.vmem %s3, %s82
    %s84 = sadd.s32 0, 0
    %p85 = scmp.lt.s32.totalorder %s84, 0
    %s86 = scalar_select %p85, %s84, 0
    %p87 = scmp.lt.s32.totalorder %s86, 0
    %s88 = scalar_select %p87, %s86, 0
    %s89 = smul.addr %s88, 2
    %s90 = scalar_lea.vmem %s0, %s89
    %s91 = sadd.s32 0, 0
    %p92 = scmp.lt.s32.totalorder %s91, 0
    %s93 = scalar_select %p92, %s91, 0
    %s94 = sadd.s32 0, 0
    %p95 = scmp.lt.s32.totalorder %s94, 0
    %s96 = scalar_select %p95, %s94, 0
    %p97 = scmp.lt.s32.totalorder %s96, 0
    %s98 = scalar_select %p97, %s96, 0
    %s99 = scalar_lea.vmem %s1, %s98
    %s100 = sadd.s32 0, 0
    %p101 = scmp.lt.s32.totalorder %s100, 0
    %s102 = scalar_select %p101, %s100, 0
    %s103 = sadd.s32 0, 0
    %p104 = scmp.lt.s32.totalorder %s103, 0
    %s105 = scalar_select %p104, %s103, 0
    %p106 = scmp.lt.s32.totalorder %s105, 0
    %s107 = scalar_select %p106, %s105, 0
    %s108 = smul.addr %s107, 2
    %s109 = scalar_lea.vmem %s2, %s108
    %s110 = sadd.s32 0, 0
    %p111 = scmp.lt.s32.totalorder %s110, 0
    %s112 = scalar_select %p111, %s110, 0
    %s113 = sadd.s32 0, 0
    %p114 = scmp.lt.s32.totalorder %s113, 0
    %s115 = scalar_select %p114, %s113, 0
    %p116 = scmp.lt.s32.totalorder %s115, 0
    %s117 = scalar_select %p116, %s115, 0
    %s118 = smul.addr %s117, 2
    %s119 = scalar_lea.vmem %s3, %s118
    %s120 = sadd.s32 0, 0
    %p121 = scmp.lt.s32.totalorder %s120, 0
    %s122 = scalar_select %p121, %s120, 0
    %p123 = scmp.eq.s32.totalorder 0, 0
    // Predicated region
    $region18: #{my_loss.1} parent=1 // pred_check
      %p124 = pneg %p123
    $region19: #{my_loss.1} parent=1 // pred_check_branch
      %126 = sbr.rel (%p124) target = $region21
    $region20: #{my_loss.1} parent=1 // pred_region
      %127 = vst [vmem:[#allocation2] sm:$0xff] 0.0
      %128 = vst [vmem:[#allocation2 + $0x8] sm:$0xff] 0.0
      %129 = vst [vmem:[#allocation2 + $0x10] sm:$0xff] 0.0
    $region21: #{my_loss.1} parent=1 // pred_fallthru
      _
    %v130 = vld [vmem:[%s90] sm:$0x3]
    %v131 = vld [vmem:[%s90 + $0x2] sm:$0x3]
    %v132 = vld [vmem:[%s99] sm:$0x1]
    %v133 = vld [vmem:[%s99 + $0x1] sm:$0x1]
    %v134 = vunpack.c.0.s8 %v132
    %v135 = vunpack.c.0.s8 %v133
    %v136 = vcvt.s32.f32 %v134
    %v137 = vcvt.s32.f32 %v135
    %v138 = vld [vmem:[%s109] sm:$0x3]
    %v139 = vld [vmem:[%s109 + $0x2] sm:$0x3]
    %v140 = vld [vmem:[%s109 + $0x4] sm:$0x3]
    %v141 = vld [vmem:[%s109 + $0x6] sm:$0x3]
    %v142 = vld [vmem:[%s119] sm:$0x3]
    %v143 = vld [vmem:[%s119 + $0x2] sm:$0x3]
    %v144 = vld [vmem:[%s119 + $0x4] sm:$0x3]
    %v145 = vld [vmem:[%s119 + $0x6] sm:$0x3]
    %v146 = vmax.f32 %v130, 0.0
    %v147 = vmax.f32 %v131, 0.0
    %v148 = vmul.f32 %v130, %v136
    %v149 = vmul.f32 %v131, %v137
    %v150 = vsub.f32 %v146, %v148
    %v151 = vsub.f32 %v147, %v149
    %v152 = vand.u32 2147483647, %v130
    %v153 = vand.u32 2147483647, %v131
    %v154 = vsub.f32 0.0, %v152
    %v155 = vsub.f32 0.0, %v153
    %v156 = vmul.f32 %v154, 1.442695
    %v157 = vpow.pop %v156
    %v158 = vmul.f32 %v155, 1.442695
    %v159 = vpow.pop %v158
    %v160 = vadd.f32 %v157, 1.0
    %v161 = vlog2.pop %v160
    %v162 = vmul.f32 %v161, 0.6931472
    %v163 = vmul.f32 -0.5, %v157
    %v164 = vadd.f32 %v163, 1.0
    %v165 = vmul.f32 %v164, %v157
    %v166 = vand.u32 2147483647, %v157
    %vm167 = vcmp.lt.f32.partialorder %v166, 0.0004427343
    %v168 = vsel %vm167, %v165, %v162
    %v169 = vadd.f32 %v159, 1.0
    %v170 = vlog2.pop %v169
    %v171 = vmul.f32 %v170, 0.6931472
    %v172 = vmul.f32 -0.5, %v159
    %v173 = vadd.f32 %v172, 1.0
    %v174 = vmul.f32 %v173, %v159
    %v175 = vand.u32 2147483647, %v159
    %vm176 = vcmp.lt.f32.partialorder %v175, 0.0004427343
    %v177 = vsel %vm176, %v174, %v171
    %v178 = vadd.f32 %v150, %v168
    %v179 = vadd.f32 %v151, %v177
    %v180 = vsub.f32 %v138, %v142
    %v181 = vsub.f32 %v139, %v143
    %v182 = vsub.f32 %v140, %v144
    %v183 = vsub.f32 %v141, %v145
    %v184 = vmul.f32 %v180, %v180
    %v185 = vmul.f32 %v181, %v181
    %v186 = vmul.f32 %v182, %v182
    %v187 = vmul.f32 %v183, %v183
    %vm188 = vcmask 1041408
    %v189 = vsel %vm188, %v184, 0.0
    %v190 = vsel %vm188, %v185, 0.0
    %v191 = vadd.f32 %v189, %v190
    %v192 = vsel %vm188, %v186, 0.0
    %v193 = vsel %vm188, %v187, 0.0
    %v194 = vadd.f32 %v192, %v193
    %vm195 = vcmp.ne.f32.partialorder %v136, 0.0
    %vm196 = vcmp.ne.f32.partialorder %v137, 0.0
    %v197 = vsel %vm195, 1, 0
    %v198 = vsel %vm196, 1, 0
    %v199 = vcvt.s32.f32 %v197
    %v200 = vcvt.s32.f32 %v198
    %v201 = vld [vmem:[#allocation2] sm:$0xff]
    %v204 = vcombine.low %v178, %v179
    %v206 = vunpack.c.l.s4 1983009808
    %v207 = vunpack.c.0.s8 %v206
    %v208 = vlaneseq
    %v209 = vshrl.u32 %v208, 7
    %v210 = vsub.s32 %v207, %v209
    %v211 = vrot.slane %v204, %v210
    %vm213 = vcmask 1043456
    %v214 = vsel %vm213, %v211, 0.0
    %v215 = vadd.f32 %v214, 0.0
    %v216 = vadd.f32 %v201, %v215
    %217 = vst [vmem:[#allocation2] sm:$0xff] %v216
    %s218 = scalar_lea.vmem [#allocation2], 8
    %v219 = vld [vmem:[%s218] sm:$0xff]
    %v220 = vmul.f32 %v191, %v199
    %v221 = vmul.f32 %v194, %v200
    %v224 = vcombine.low %v220, %v221
    %v226 = vunpack.c.l.s4 1983009808
    %v227 = vunpack.c.0.s8 %v226
    %v228 = vlaneseq
    %v229 = vshrl.u32 %v228, 7
    %v230 = vsub.s32 %v227, %v229
    %v231 = vrot.slane %v224, %v230
    %v233 = vsel %vm213, %v231, 0.0
    %v234 = vadd.f32 %v233, 0.0
    %v235 = vadd.f32 %v219, %v234
    %236 = vst [vmem:[%s218] sm:$0xff] %v235
    %s237 = scalar_lea.vmem [#allocation2], 16
    %v238 = vld [vmem:[%s237] sm:$0xff]
    %v241 = vcombine.low %v199, %v200
    %v243 = vunpack.c.l.s4 1983009808
    %v244 = vunpack.c.0.s8 %v243
    %v245 = vlaneseq
    %v246 = vshrl.u32 %v245, 7
    %v247 = vsub.s32 %v244, %v246
    %v248 = vrot.slane %v241, %v247
    %v250 = vsel %vm213, %v248, 0.0
    %v251 = vadd.f32 %v250, 0.0
    %v252 = vadd.f32 %v238, %v251
    %253 = vst [vmem:[%s237] sm:$0xff] %v252
    // Predicated region
    $region22: #{my_loss.1} parent=1 // pred_check
      %p254 = pneg %p123
    $region23: #{my_loss.1} parent=1 // pred_check_branch
      %256 = sbr.rel (%p254) target = $region25
    $region24: #{my_loss.1} parent=1 // pred_region
      %v257 = vld [vmem:[#allocation2] sm:$0xff]
      %258 = vadd.xlane.f32.xlu0 %v257
      %v259 = vpop.xlane.xlu0 %258
      %v260 = vrot.slane %v259, 4
      %v261 = vadd.f32 %v259, %v260
      %v262 = vrot.slane %v261, 2
      %v263 = vadd.f32 %v261, %v262
      %v264 = vrot.slane %v263, 1
      %v265 = vadd.f32 %v263, %v264
      %s266 = vtos %v265
      %s267 = scalar_lea.smem [#allocation3], 0
      %268 = sst [smem:[%s267]] %s266
      %v269 = vld [vmem:[%s218] sm:$0xff]
      %270 = vadd.xlane.f32.xlu0 %v269
      %v271 = vpop.xlane.xlu0 %270
      %v272 = vrot.slane %v271, 4
      %v273 = vadd.f32 %v271, %v272
      %v274 = vrot.slane %v273, 2
      %v275 = vadd.f32 %v273, %v274
      %v276 = vrot.slane %v275, 1
      %v277 = vadd.f32 %v275, %v276
      %s278 = vtos %v277
      %s279 = scalar_lea.smem [#allocation3], 1
      %280 = sst [smem:[%s279]] %s278
      %v281 = vld [vmem:[%s237] sm:$0xff]
      %282 = vadd.xlane.f32.xlu0 %v281
      %v283 = vpop.xlane.xlu0 %282
      %v284 = vrot.slane %v283, 4
      %v285 = vadd.f32 %v283, %v284
      %v286 = vrot.slane %v285, 2
      %v287 = vadd.f32 %v285, %v286
      %v288 = vrot.slane %v287, 1
      %v289 = vadd.f32 %v287, %v288
      %s290 = vtos %v289
      %s291 = scalar_lea.smem [#allocation3], 2
      %292 = sst [smem:[%s291]] %s290
    $region25: #{my_loss.1} parent=1 // pred_fallthru
      _
    // Predicated region
    $region26: #{my_loss.1} parent=1 // pred_check
      _
    $region27: #{my_loss.1} parent=1 // pred_check_branch
      %294 = sbr.rel (0) target = $region29
    $region28: #{my_loss.1} parent=1 // pred_region
      %s296 = ssub.s32 16, 16
      %297 = vsyncadd [#allocation4], %s296
      %s299 = sshll.u32 %s4, 4
      %s300 = int_to_ptr.vmem [resolvable:$true] %s299
      %302 = dma.smem_to_vmem [#allocation3], 16, %s300, [#allocation4]
    $region29: #{my_loss.1} parent=1 // pred_fallthru
      _
    // Predicated region
    $region30: #{my_loss.1} parent=1 // pred_check
      _
    $region31: #{my_loss.1} parent=1 // pred_check_branch
      %304 = sbr.rel (0) target = $region33
    $region32: #{my_loss.1} parent=1 // pred_region
      %305 = dma.done [#allocation4], 16
    $region33: #{my_loss.1} parent=1 // pred_fallthru
      _
    %306 = sfence
    %307 = vsyncpa [#allocation4], 1

</llo_original>
